<compile_context>
chip_gen: v5e
topology: v5e:2x2
jax: 0.10.0
libtpu: 0.0.40
codegen_flags: <defaults>
</compile_context>

<pallas_src>
import functools

import jax
import jax.numpy as jnp
from jax.experimental import pallas as pl
from jax.experimental.pallas import tpu as pltpu


def _ffn_kernel(x_ref, w1_ref, b1_ref, w2_ref, b2_ref, o_ref, acc_ref, *,
                mxu_dtype):
    # x_ref:  (TM, d_model)        w1_ref: (d_model, TK)   b1_ref: (1, TK)
    # w2_ref: (TK, d_model)        b2_ref: (1, d_model)
    # o_ref:  (TM, d_model)        acc_ref: (TM, d_model) f32 scratch
    k = pl.program_id(1)

    @pl.when(k == 0)
    def _init():
        acc_ref[...] = jnp.zeros_like(acc_ref)

    # linear1 (hidden slice) + bias + ReLU, bf16 MXU inputs, f32 accumulation.
    x = x_ref[...].astype(mxu_dtype)
    w1 = w1_ref[...].astype(mxu_dtype)
    h = jnp.dot(x, w1, preferred_element_type=jnp.float32)
    h = h + b1_ref[...].astype(jnp.float32)
    h = jnp.maximum(h, 0.0)

    # Dropout: identity in eval mode.
    # TODO(synk): training-mode dropout mask not implemented.

    # linear2 partial product over this hidden slice, accumulated in f32.
    acc_ref[...] += jnp.dot(h.astype(mxu_dtype), w2_ref[...].astype(mxu_dtype),
                            preferred_element_type=jnp.float32)

    @pl.when(k == pl.num_programs(1) - 1)
    def _finalize():
        out = acc_ref[...] + b2_ref[...].astype(jnp.float32)
        o_ref[...] = out.astype(o_ref.dtype)


def _choose_tiles(m, d_model, hidden, w_itemsize, vmem_cap, block_m):
    # Row tile (generation aware: 64 MiB VMEM parts get a smaller tile).
    if block_m is None:
        block_m = 256 if vmem_cap <= 96 * 1024 * 1024 else 512
    if m <= block_m:
        tm = m                              # full extent -> no (8,128) constraint
    else:
        tm = max(8, (block_m // 8) * 8)

    # Hidden tile: lane aligned (multiple of 128), must divide hidden so the
    # accumulation over the contraction axis never reads out-of-bounds weights.
    weight_budget = vmem_cap // 3           # double-buffered w1+w2 slices
    max_tk = weight_budget // max(1, 4 * d_model * w_itemsize)
    max_tk = min(max(max_tk, 128), 2048)
    max_tk = (max_tk // 128) * 128
    if hidden <= max(max_tk, 128):
        tk = hidden
    else:
        tk = None
        for cand in range(max_tk, 127, -128):
            if hidden % cand == 0:
                tk = cand
                break
        if tk is None:
            tk = hidden                      # no aligned divisor: keep whole
    return tm, tk


def positionwise_feed_forward(x, w1, b1, w2, b2, *, block_m=None,
                              mxu_dtype=jnp.bfloat16):
    """JAX/Pallas equivalent of PositionwiseFeedForward.forward (eval mode).

    x:  (..., d_model)
    w1: (d_model, hidden),  b1: (hidden,)
    w2: (hidden, d_model),  b2: (d_model,)
    """
    orig_shape = x.shape
    d_model = orig_shape[-1]
    hidden = w1.shape[1]
    assert w1.shape == (d_model, hidden)
    assert w2.shape == (hidden, d_model)
    assert b1.shape == (hidden,)
    assert b2.shape == (d_model,)

    x2 = x.reshape(-1, d_model)
    m = x2.shape[0]

    try:
        vmem_cap = int(pltpu.get_tpu_info().vmem_capacity_bytes)
    except Exception:
        vmem_cap = 64 * 1024 * 1024

    x_item = x.dtype.itemsize
    w_item = w1.dtype.itemsize
    tm, tk = _choose_tiles(m, d_model, hidden, w_item, vmem_cap, block_m)

    num_k = hidden // tk
    grid = (pl.cdiv(m, tm), num_k)
    weights_resident = (num_k == 1)          # constant index_map across the grid

    b1_2d = b1.reshape(1, hidden)
    b2_2d = b2.reshape(1, d_model)

    # Explicit VMEM budget: x/out double buffers + weight slices + acc scratch
    # + (tm, tk) f32 intermediate, with headroom, capped below physical VMEM.
    need = (2 * tm * d_model * x_item                       # x buffers
            + 2 * tm * d_model * x_item                     # out buffers
            + 2 * (d_model * tk + tk * d_model + tk + d_model) * w_item
            + tm * d_model * 4                              # acc scratch
            + tm * tk * 4)                                  # h intermediate
    vmem_limit = int(min(max(2 * need + (8 << 20), 32 << 20),
                         int(vmem_cap * 0.9)))

    cost = pl.CostEstimate(
        flops=4 * m * d_model * hidden,
        transcendentals=0,
        bytes_accessed=int(2 * m * d_model * x_item
                           + (w1.size + w2.size + b1.size + b2.size) * w_item),
    )

    kernel = functools.partial(_ffn_kernel, mxu_dtype=mxu_dtype)

    def _call(single_buffer_resident):
        resident_mode = pl.Buffered(1) if single_buffer_resident else None
        w_mode = resident_mode if weights_resident else None
        grid_spec = pltpu.PrefetchScalarGridSpec(
            num_scalar_prefetch=0,
            grid=grid,
            in_specs=[
                pl.BlockSpec((tm, d_model), lambda i, k: (i, 0)),      # x tile
                pl.BlockSpec((d_model, tk), lambda i, k: (0, k),
                             pipeline_mode=w_mode),                    # w1 slice
                pl.BlockSpec((1, tk), lambda i, k: (0, k),
                             pipeline_mode=w_mode),                    # b1 slice
                pl.BlockSpec((tk, d_model), lambda i, k: (k, 0),
                             pipeline_mode=w_mode),                    # w2 slice
                pl.BlockSpec((1, d_model), lambda i, k: (0, 0),
                             pipeline_mode=resident_mode),             # b2
            ],
            out_specs=pl.BlockSpec((tm, d_model), lambda i, k: (i, 0)),
            scratch_shapes=[pltpu.VMEM((tm, d_model), jnp.float32)],
        )
        return pl.pallas_call(
            kernel,
            out_shape=jax.ShapeDtypeStruct((m, d_model), x.dtype),
            grid_spec=grid_spec,
            compiler_params=pltpu.CompilerParams(
                dimension_semantics=("parallel", "arbitrary"),
                vmem_limit_bytes=vmem_limit,
            ),
            cost_estimate=cost,
        )(x2, w1, b1_2d, w2, b2_2d)

    try:
        out2d = _call(True)
    except Exception:
        # pl.Buffered(1) (single-buffered resident weights) unsupported by this
        # jax/Mosaic build -> fall back to default double buffering.
        out2d = _call(False)

    return out2d.reshape(orig_shape)


def _reference(x, w1, b1, w2, b2):
    h = jnp.maximum(jnp.einsum("...d,dh->...h", x, w1) + b1, 0.0)
    return jnp.einsum("...h,hd->...d", h, w2) + b2


if __name__ == "__main__":
    key = jax.random.PRNGKey(0)
    kx, kw1, kb1, kw2, kb2, kx2 = jax.random.split(key, 6)

    batch, seq, d_model, hidden = 2, 8, 64, 128
    x = jax.random.normal(kx, (batch, seq, d_model), dtype=jnp.float32)
    w1 = jax.random.normal(kw1, (d_model, hidden), dtype=jnp.float32) * 0.1
    b1 = jax.random.normal(kb1, (hidden,), dtype=jnp.float32) * 0.1
    w2 = jax.random.normal(kw2, (hidden, d_model), dtype=jnp.float32) * 0.1
    b2 = jax.random.normal(kb2, (d_model,), dtype=jnp.float32) * 0.1

    # Single row-tile path (rows <= block_m): everything resident.
    out = positionwise_feed_forward(x, w1, b1, w2, b2)
    jax.block_until_ready(out)
    out_ref = _reference(x, w1, b1, w2, b2)
    assert out.shape == x.shape and out.dtype == x.dtype
    # bf16 MXU inputs -> slightly looser tolerance than pure f32.
    assert jnp.allclose(out, out_ref, atol=5e-2, rtol=5e-2), float(
        jnp.max(jnp.abs(out - out_ref)))

    # Multi-tile + ragged-last-row-tile path (18 rows, 8-row tiles, no padding).
    x_big = jax.random.normal(kx2, (2, 9, d_model), dtype=jnp.float32)
    out_big = positionwise_feed_forward(x_big, w1, b1, w2, b2, block_m=8)
    jax.block_until_ready(out_big)
    out_big_ref = _reference(x_big, w1, b1, w2, b2)
    assert out_big.shape == x_big.shape
    assert jnp.allclose(out_big, out_big_ref, atol=5e-2, rtol=5e-2), float(
        jnp.max(jnp.abs(out_big - out_big_ref)))

    print("KERNEL_OK")
</pallas_src>

<mosaic_0001>
module attributes {stable_mosaic.version = 11 : i64} {
  func.func @_ffn_kernel(%arg0: i32, %arg1: i32, %arg2: memref<16x64xf32, #tpu.memory_space<vmem>>, %arg3: memref<64x128xf32, #tpu.memory_space<vmem>>, %arg4: memref<1x128xf32, #tpu.memory_space<vmem>>, %arg5: memref<128x64xf32, #tpu.memory_space<vmem>>, %arg6: memref<1x64xf32, #tpu.memory_space<vmem>>, %arg7: memref<16x64xf32, #tpu.memory_space<vmem>>, %arg8: memref<16x64xf32, #tpu.memory_space<vmem>>) attributes {dimension_semantics = [#tpu.dimension_semantics<parallel>, #tpu.dimension_semantics<arbitrary>], iteration_bounds = array<i64: 1, 1>, scalar_prefetch = 0 : i64, scratch_operands = 1 : i64, tpu.core_type = #tpu.core_type<tc>, window_params = [{transform_indices = @transform_0, window_bounds = array<i64: 16, 64>}, {pipeline_mode = #tpu.pipeline_mode<synchronous>, transform_indices = @transform_1, window_bounds = array<i64: 64, 128>}, {pipeline_mode = #tpu.pipeline_mode<synchronous>, transform_indices = @transform_2, window_bounds = array<i64: 1, 128>}, {pipeline_mode = #tpu.pipeline_mode<synchronous>, transform_indices = @transform_3, window_bounds = array<i64: 128, 64>}, {pipeline_mode = #tpu.pipeline_mode<synchronous>, transform_indices = @transform_4, window_bounds = array<i64: 1, 64>}, {transform_indices = @transform_5, window_bounds = array<i64: 16, 64>}]} {
    %c0_i32 = arith.constant 0 : i32
    %0 = arith.cmpi eq, %arg1, %c0_i32 : i32
    %1 = arith.extui %0 : i1 to i32
    %c0_i32_0 = arith.constant 0 : i32
    %2 = arith.cmpi ne, %1, %c0_i32_0 : i32
    scf.if %2 {
      %cst_16 = arith.constant 0.000000e+00 : f32
      %23 = vector.broadcast %cst_16 : f32 to vector<16x64xf32>
      %c0_17 = arith.constant 0 : index
      %c0_18 = arith.constant 0 : index
      %24 = vector.load %arg8[%c0_17, %c0_18] : memref<16x64xf32, #tpu.memory_space<vmem>>, vector<16x64xf32>
      tpu.vector_store %arg8[%c0_17, %c0_18], %23 {strides = array<i32>} : memref<16x64xf32, #tpu.memory_space<vmem>>, vector<16x64xf32>,
    } else {
    }
    %c0 = arith.constant 0 : index
    %c0_1 = arith.constant 0 : index
    %3 = vector.load %arg2[%c0, %c0_1] : memref<16x64xf32, #tpu.memory_space<vmem>>, vector<16x64xf32>
    %4 = arith.truncf %3 : vector<16x64xf32> to vector<16x64xbf16>
    %c0_2 = arith.constant 0 : index
    %c0_3 = arith.constant 0 : index
    %5 = vector.load %arg3[%c0_2, %c0_3] : memref<64x128xf32, #tpu.memory_space<vmem>>, vector<64x128xf32>
    %6 = arith.truncf %5 : vector<64x128xf32> to vector<64x128xbf16>
    %cst = arith.constant dense<0.000000e+00> : vector<16x128xf32>
    %7 = tpu.matmul %4, %6, %cst {dimension_numbers = #tpu.dot_dimension_numbers<[1], [0], [0], [1], [0, 0, 1, 1], [], []>} : vector<16x64xbf16>, vector<64x128xbf16>, vector<16x128xf32> -> vector<16x128xf32>
    %c0_4 = arith.constant 0 : index
    %c0_5 = arith.constant 0 : index
    %8 = vector.load %arg4[%c0_4, %c0_5] : memref<1x128xf32, #tpu.memory_space<vmem>>, vector<1x128xf32>
    %9 = vector.broadcast %8 : vector<1x128xf32> to vector<16x128xf32>
    %10 = arith.addf %7, %9 : vector<16x128xf32>
    %cst_6 = arith.constant 0.000000e+00 : f32
    %11 = vector.broadcast %cst_6 : f32 to vector<16x128xf32>
    %12 = arith.maximumf %10, %11 : vector<16x128xf32>
    %c0_7 = arith.constant 0 : index
    %c0_8 = arith.constant 0 : index
    %13 = vector.load %arg8[%c0_7, %c0_8] : memref<16x64xf32, #tpu.memory_space<vmem>>, vector<16x64xf32>
    %14 = arith.truncf %12 : vector<16x128xf32> to vector<16x128xbf16>
    %c0_9 = arith.constant 0 : index
    %c0_10 = arith.constant 0 : index
    %15 = vector.load %arg5[%c0_9, %c0_10] : memref<128x64xf32, #tpu.memory_space<vmem>>, vector<128x64xf32>
    %16 = arith.truncf %15 : vector<128x64xf32> to vector<128x64xbf16>
    %cst_11 = arith.constant dense<0.000000e+00> : vector<16x64xf32>
    %17 = tpu.matmul %14, %16, %cst_11 {dimension_numbers = #tpu.dot_dimension_numbers<[1], [0], [0], [1], [0, 0, 1, 1], [], []>} : vector<16x128xbf16>, vector<128x64xbf16>, vector<16x64xf32> -> vector<16x64xf32>
    %18 = arith.addf %13, %17 : vector<16x64xf32>
    %c0_12 = arith.constant 0 : index
    %c0_13 = arith.constant 0 : index
    %19 = vector.load %arg8[%c0_12, %c0_13] : memref<16x64xf32, #tpu.memory_space<vmem>>, vector<16x64xf32>
    tpu.vector_store %arg8[%c0_12, %c0_13], %18 {strides = array<i32>} : memref<16x64xf32, #tpu.memory_space<vmem>>, vector<16x64xf32>,
    %c0_i32_14 = arith.constant 0 : i32
    %20 = arith.cmpi eq, %arg1, %c0_i32_14 : i32
    %21 = arith.extui %20 : i1 to i32
    %c0_i32_15 = arith.constant 0 : i32
    %22 = arith.cmpi ne, %21, %c0_i32_15 : i32
    scf.if %22 {
      %c0_16 = arith.constant 0 : index
      %c0_17 = arith.constant 0 : index
      %23 = vector.load %arg8[%c0_16, %c0_17] : memref<16x64xf32, #tpu.memory_space<vmem>>, vector<16x64xf32>
      %c0_18 = arith.constant 0 : index
      %c0_19 = arith.constant 0 : index
      %24 = vector.load %arg6[%c0_18, %c0_19] : memref<1x64xf32, #tpu.memory_space<vmem>>, vector<1x64xf32>
      %25 = vector.broadcast %24 : vector<1x64xf32> to vector<16x64xf32>
      %26 = arith.addf %23, %25 : vector<16x64xf32>
      %c0_20 = arith.constant 0 : index
      %c0_21 = arith.constant 0 : index
      %27 = vector.load %arg7[%c0_20, %c0_21] : memref<16x64xf32, #tpu.memory_space<vmem>>, vector<16x64xf32>
      tpu.vector_store %arg7[%c0_20, %c0_21], %26 {strides = array<i32>} : memref<16x64xf32, #tpu.memory_space<vmem>>, vector<16x64xf32>,
    } else {
    }
    return
  }
  func.func @transform_0(%arg0: i32, %arg1: i32) -> (i32, i32) {
    %c0_i32 = arith.constant 0 : i32
    %c0_i32_0 = arith.constant 0 : i32
    return %arg0, %c0_i32 : i32, i32
  }
  func.func @transform_1(%arg0: i32, %arg1: i32) -> (i32, i32) {
    %c0_i32 = arith.constant 0 : i32
    %c0_i32_0 = arith.constant 0 : i32
    return %c0_i32, %arg1 : i32, i32
  }
  func.func @transform_2(%arg0: i32, %arg1: i32) -> (i32, i32) {
    %c0_i32 = arith.constant 0 : i32
    %c0_i32_0 = arith.constant 0 : i32
    return %c0_i32, %arg1 : i32, i32
  }
  func.func @transform_3(%arg0: i32, %arg1: i32) -> (i32, i32) {
    %c0_i32 = arith.constant 0 : i32
    %c0_i32_0 = arith.constant 0 : i32
    return %arg1, %c0_i32 : i32, i32
  }
  func.func @transform_4(%arg0: i32, %arg1: i32) -> (i32, i32) {
    %c0_i32 = arith.constant 0 : i32
    %c0_i32_0 = arith.constant 0 : i32
    %c0_i32_1 = arith.constant 0 : i32
    return %c0_i32, %c0_i32_0 : i32, i32
  }
  func.func @transform_5(%arg0: i32, %arg1: i32) -> (i32, i32) {
    %c0_i32 = arith.constant 0 : i32
    %c0_i32_0 = arith.constant 0 : i32
    return %arg0, %c0_i32 : i32, i32
  }
}

module attributes {stable_mosaic.version = 11 : i64} {
  func.func @_ffn_kernel(%arg0: i32, %arg1: i32, %arg2: memref<16x64xf32, #tpu.memory_space<vmem>>, %arg3: memref<64x128xf32, #tpu.memory_space<vmem>>, %arg4: memref<1x128xf32, #tpu.memory_space<vmem>>, %arg5: memref<128x64xf32, #tpu.memory_space<vmem>>, %arg6: memref<1x64xf32, #tpu.memory_space<vmem>>, %arg7: memref<16x64xf32, #tpu.memory_space<vmem>>, %arg8: memref<16x64xf32, #tpu.memory_space<vmem>>) attributes {dimension_semantics = [#tpu.dimension_semantics<parallel>, #tpu.dimension_semantics<arbitrary>], iteration_bounds = array<i64: 1, 1>, scalar_prefetch = 0 : i64, scratch_operands = 1 : i64, tpu.core_type = #tpu.core_type<tc>, window_params = [{transform_indices = @transform_0, window_bounds = array<i64: 16, 64>}, {transform_indices = @transform_1, window_bounds = array<i64: 64, 128>}, {transform_indices = @transform_2, window_bounds = array<i64: 1, 128>}, {transform_indices = @transform_3, window_bounds = array<i64: 128, 64>}, {pipeline_mode = #tpu.pipeline_mode<synchronous>, transform_indices = @transform_4, window_bounds = array<i64: 1, 64>}, {transform_indices = @transform_5, window_bounds = array<i64: 16, 64>}]} {
    %c0_i32 = arith.constant 0 : i32
    %0 = arith.cmpi eq, %arg1, %c0_i32 : i32
    %1 = arith.extui %0 : i1 to i32
    %c0_i32_0 = arith.constant 0 : i32
    %2 = arith.cmpi ne, %1, %c0_i32_0 : i32
    scf.if %2 {
      %cst_16 = arith.constant 0.000000e+00 : f32
      %23 = vector.broadcast %cst_16 : f32 to vector<16x64xf32>
      %c0_17 = arith.constant 0 : index
      %c0_18 = arith.constant 0 : index
      %24 = vector.load %arg8[%c0_17, %c0_18] : memref<16x64xf32, #tpu.memory_space<vmem>>, vector<16x64xf32>
      tpu.vector_store %arg8[%c0_17, %c0_18], %23 {strides = array<i32>} : memref<16x64xf32, #tpu.memory_space<vmem>>, vector<16x64xf32>,
    } else {
    }
    %c0 = arith.constant 0 : index
    %c0_1 = arith.constant 0 : index
    %3 = vector.load %arg2[%c0, %c0_1] : memref<16x64xf32, #tpu.memory_space<vmem>>, vector<16x64xf32>
    %4 = arith.truncf %3 : vector<16x64xf32> to vector<16x64xbf16>
    %c0_2 = arith.constant 0 : index
    %c0_3 = arith.constant 0 : index
    %5 = vector.load %arg3[%c0_2, %c0_3] : memref<64x128xf32, #tpu.memory_space<vmem>>, vector<64x128xf32>
    %6 = arith.truncf %5 : vector<64x128xf32> to vector<64x128xbf16>
    %cst = arith.constant dense<0.000000e+00> : vector<16x128xf32>
    %7 = tpu.matmul %4, %6, %cst {dimension_numbers = #tpu.dot_dimension_numbers<[1], [0], [0], [1], [0, 0, 1, 1], [], []>} : vector<16x64xbf16>, vector<64x128xbf16>, vector<16x128xf32> -> vector<16x128xf32>
    %c0_4 = arith.constant 0 : index
    %c0_5 = arith.constant 0 : index
    %8 = vector.load %arg4[%c0_4, %c0_5] : memref<1x128xf32, #tpu.memory_space<vmem>>, vector<1x128xf32>
    %9 = vector.broadcast %8 : vector<1x128xf32> to vector<16x128xf32>
    %10 = arith.addf %7, %9 : vector<16x128xf32>
    %cst_6 = arith.constant 0.000000e+00 : f32
    %11 = vector.broadcast %cst_6 : f32 to vector<16x128xf32>
    %12 = arith.maximumf %10, %11 : vector<16x128xf32>
    %c0_7 = arith.constant 0 : index
    %c0_8 = arith.constant 0 : index
    %13 = vector.load %arg8[%c0_7, %c0_8] : memref<16x64xf32, #tpu.memory_space<vmem>>, vector<16x64xf32>
    %14 = arith.truncf %12 : vector<16x128xf32> to vector<16x128xbf16>
    %c0_9 = arith.constant 0 : index
    %c0_10 = arith.constant 0 : index
    %15 = vector.load %arg5[%c0_9, %c0_10] : memref<128x64xf32, #tpu.memory_space<vmem>>, vector<128x64xf32>
    %16 = arith.truncf %15 : vector<128x64xf32> to vector<128x64xbf16>
    %cst_11 = arith.constant dense<0.000000e+00> : vector<16x64xf32>
    %17 = tpu.matmul %14, %16, %cst_11 {dimension_numbers = #tpu.dot_dimension_numbers<[1], [0], [0], [1], [0, 0, 1, 1], [], []>} : vector<16x128xbf16>, vector<128x64xbf16>, vector<16x64xf32> -> vector<16x64xf32>
    %18 = arith.addf %13, %17 : vector<16x64xf32>
    %c0_12 = arith.constant 0 : index
    %c0_13 = arith.constant 0 : index
    %19 = vector.load %arg8[%c0_12, %c0_13] : memref<16x64xf32, #tpu.memory_space<vmem>>, vector<16x64xf32>
    tpu.vector_store %arg8[%c0_12, %c0_13], %18 {strides = array<i32>} : memref<16x64xf32, #tpu.memory_space<vmem>>, vector<16x64xf32>,
    %c0_i32_14 = arith.constant 0 : i32
    %20 = arith.cmpi eq, %arg1, %c0_i32_14 : i32
    %21 = arith.extui %20 : i1 to i32
    %c0_i32_15 = arith.constant 0 : i32
    %22 = arith.cmpi ne, %21, %c0_i32_15 : i32
    scf.if %22 {
      %c0_16 = arith.constant 0 : index
      %c0_17 = arith.constant 0 : index
      %23 = vector.load %arg8[%c0_16, %c0_17] : memref<16x64xf32, #tpu.memory_space<vmem>>, vector<16x64xf32>
      %c0_18 = arith.constant 0 : index
      %c0_19 = arith.constant 0 : index
      %24 = vector.load %arg6[%c0_18, %c0_19] : memref<1x64xf32, #tpu.memory_space<vmem>>, vector<1x64xf32>
      %25 = vector.broadcast %24 : vector<1x64xf32> to vector<16x64xf32>
      %26 = arith.addf %23, %25 : vector<16x64xf32>
      %c0_20 = arith.constant 0 : index
      %c0_21 = arith.constant 0 : index
      %27 = vector.load %arg7[%c0_20, %c0_21] : memref<16x64xf32, #tpu.memory_space<vmem>>, vector<16x64xf32>
      tpu.vector_store %arg7[%c0_20, %c0_21], %26 {strides = array<i32>} : memref<16x64xf32, #tpu.memory_space<vmem>>, vector<16x64xf32>,
    } else {
    }
    return
  }
  func.func @transform_0(%arg0: i32, %arg1: i32) -> (i32, i32) {
    %c0_i32 = arith.constant 0 : i32
    %c0_i32_0 = arith.constant 0 : i32
    return %arg0, %c0_i32 : i32, i32
  }
  func.func @transform_1(%arg0: i32, %arg1: i32) -> (i32, i32) {
    %c0_i32 = arith.constant 0 : i32
    %c0_i32_0 = arith.constant 0 : i32
    return %c0_i32, %arg1 : i32, i32
  }
  func.func @transform_2(%arg0: i32, %arg1: i32) -> (i32, i32) {
    %c0_i32 = arith.constant 0 : i32
    %c0_i32_0 = arith.constant 0 : i32
    return %c0_i32, %arg1 : i32, i32
  }
  func.func @transform_3(%arg0: i32, %arg1: i32) -> (i32, i32) {
    %c0_i32 = arith.constant 0 : i32
    %c0_i32_0 = arith.constant 0 : i32
    return %arg1, %c0_i32 : i32, i32
  }
  func.func @transform_4(%arg0: i32, %arg1: i32) -> (i32, i32) {
    %c0_i32 = arith.constant 0 : i32
    %c0_i32_0 = arith.constant 0 : i32
    %c0_i32_1 = arith.constant 0 : i32
    return %c0_i32, %c0_i32_0 : i32, i32
  }
  func.func @transform_5(%arg0: i32, %arg1: i32) -> (i32, i32) {
    %c0_i32 = arith.constant 0 : i32
    %c0_i32_0 = arith.constant 0 : i32
    return %arg0, %c0_i32 : i32, i32
  }
}

</mosaic_0001>

<llo_original>
// kernel: tpu_custom_call.1
$region0: #{tpu_custom_call.1}
  #allocation0 [shape = 'u32[]', space=smem, size = 0x4, offset = 0x4, fixed_abs, tag = 'smem constant byte address 0x4 - core index']
  #allocation1 [shape = 'u32[72,128]{1,0:T(1,128)}', space=vmem, size = 0x9000, scoped, tag = 'internal scratch']
  #allocation2 [shape = 'f32[16,64]{1,0:T(8,128)}', space=vmem, size = 0x2000, scoped, tag = 'scratch operand']
  %s0 = inlined_call_operand.vmem [shape: f32[16,64], index: 0, kind: input, shape index: {}]
  %s1 = inlined_call_operand.vmem [shape: f32[64,128], index: 1, kind: input, shape index: {}]
  %s2 = inlined_call_operand.vmem [shape: f32[1,128], index: 2, kind: input, shape index: {}]
  %s3 = inlined_call_operand.vmem [shape: f32[128,64], index: 3, kind: input, shape index: {}]
  %s4 = inlined_call_operand.vmem [shape: f32[1,64], index: 4, kind: input, shape index: {}]
  %s5 = inlined_call_operand.hbm [shape: f32[16,64], index: 5, kind: output, shape index: {}]
  %s6 = sld [smem:[#allocation0]]
  $region38: #{tpu_custom_call.1} parent=0
    _
  %s8 = ssub.s32 1, %s6
  %s9 = scalar_select 0, %s8, %s6
  $region1: #{tpu_custom_call.1} parent=0
    #allocation3 [shape = 'u8[8192]{0}', space=vmem, size = 0x2000, scoped, tag = 'output window, operand 0, single buffered']
    #allocation4 [shape = 's32[1]{0}', space=sflag, size = 0x4, scoped, tag = 'scoped memory for tpu_custom_call.1']
    %10 = vsyncpa [#allocation4], 0
    // Predicated region
    $region2: #{tpu_custom_call.1} parent=1 // pred_check
      _
    $region3: #{tpu_custom_call.1} parent=1 // pred_check_branch
      %12 = sbr.rel (0) target = $region5
    $region4: #{tpu_custom_call.1} parent=1 // pred_region
      _
    $region5: #{tpu_custom_call.1} parent=1 // pred_fallthru
      _
    // Predicated region
    $region6: #{tpu_custom_call.1} parent=1 // pred_check
      _
    $region7: #{tpu_custom_call.1} parent=1 // pred_check_branch
      %14 = sbr.rel (0) target = $region9
    $region8: #{tpu_custom_call.1} parent=1 // pred_region
      _
    $region9: #{tpu_custom_call.1} parent=1 // pred_fallthru
      _
    // Predicated region
    $region10: #{tpu_custom_call.1} parent=1 // pred_check
      _
    $region11: #{tpu_custom_call.1} parent=1 // pred_check_branch
      %16 = sbr.rel (0) target = $region13
    $region12: #{tpu_custom_call.1} parent=1 // pred_region
      _
    $region13: #{tpu_custom_call.1} parent=1 // pred_fallthru
      _
    // Predicated region
    $region14: #{tpu_custom_call.1} parent=1 // pred_check
      _
    $region15: #{tpu_custom_call.1} parent=1 // pred_check_branch
      %18 = sbr.rel (0) target = $region17
    $region16: #{tpu_custom_call.1} parent=1 // pred_region
      _
    $region17: #{tpu_custom_call.1} parent=1 // pred_fallthru
      _
    // Predicated region
    $region18: #{tpu_custom_call.1} parent=1 // pred_check
      _
    $region19: #{tpu_custom_call.1} parent=1 // pred_check_branch
      %20 = sbr.rel (0) target = $region21
    $region20: #{tpu_custom_call.1} parent=1 // pred_region
      _
    $region21: #{tpu_custom_call.1} parent=1 // pred_fallthru
      _
    %p22 = scmp.eq.s32.totalorder 0, 0
    // Predicated region
    $region22: #{tpu_custom_call.1} parent=1 // pred_check
      %p23 = pneg %p22
    $region23: #{tpu_custom_call.1} parent=1 // pred_check_branch
      %25 = sbr.rel (%p23) target = $region25
    $region24: #{tpu_custom_call.1} parent=1 // pred_region
      %vm26 = vcmask 523264
      %27 = vst.msk [vmem:[#allocation2] sm:$0xff] %vm26, 0.0
      %28 = vst.msk [vmem:[#allocation2 + $0x8] sm:$0xff] %vm26, 0.0
    $region25: #{tpu_custom_call.1} parent=1 // pred_fallthru
      _
    %v29 = vld [vmem:[%s0] sm:$0xff]
    %v30 = vld [vmem:[%s0 + $0x8] sm:$0xff]
    %v31 = vpack.c.bf16 %v30, %v29
    %v32 = vld [vmem:[%s1] sm:$0xff]
    %v33 = vld [vmem:[%s1 + $0x8] sm:$0xff]
    %v34 = vld [vmem:[%s1 + $0x10] sm:$0xff]
    %v35 = vld [vmem:[%s1 + $0x18] sm:$0xff]
    %v36 = vld [vmem:[%s1 + $0x20] sm:$0xff]
    %v37 = vld [vmem:[%s1 + $0x28] sm:$0xff]
    %v38 = vld [vmem:[%s1 + $0x30] sm:$0xff]
    %v39 = vld [vmem:[%s1 + $0x38] sm:$0xff]
    %v40 = vpack.c.bf16 %v33, %v32
    %v41 = vpack.c.bf16 %v35, %v34
    %v42 = vpack.c.bf16 %v37, %v36
    %v43 = vpack.c.bf16 %v39, %v38
    %v44 = vld [vmem:[%s2] sm:$0x1]
    %v46 = vperm.slane %v44, 0
    %vm48 = vcmask 523264
    %v50 = vsel %vm48, %v31, 0
    %52 = vmatpush.bf16.msra.mxu0 0
    %53 = vmatpush.bf16.msra.mxu0 0
    %54 = vmatpush.bf16.msra.mxu0 0
    %55 = vmatpush.bf16.msra.mxu0 0
    %56 = vmatpush.bf16.msra.mxu0 %v43
    %57 = vmatpush.bf16.msra.mxu0 %v42
    %58 = vmatpush.bf16.msra.mxu0 %v41
    %59 = vmatpush.bf16.msra.mxu0 %v40
    %60 = vmatmul.bf16.gmra.mxu0 %v50
    %v61 = vpop.f32.mrf.mxu0
    %v62 = vadd.f32 %v46, %v61
    %v63 = vpop.f32.mrf.mxu0
    %v64 = vadd.f32 %v46, %v63
    %65 = vdwg.mxu0
    %v66 = vmax.f32 %v62, 0.0
    %v67 = vmax.f32 %v64, 0.0
    %v68 = vld [vmem:[#allocation2] sm:$0xff]
    %v69 = vld [vmem:[#allocation2 + $0x8] sm:$0xff]
    %v70 = vpack.c.bf16 %v67, %v66
    %v71 = vld [vmem:[%s3] sm:$0xff]
    %v72 = vld [vmem:[%s3 + $0x8] sm:$0xff]
    %v73 = vld [vmem:[%s3 + $0x10] sm:$0xff]
    %v74 = vld [vmem:[%s3 + $0x18] sm:$0xff]
    %v75 = vld [vmem:[%s3 + $0x20] sm:$0xff]
    %v76 = vld [vmem:[%s3 + $0x28] sm:$0xff]
    %v77 = vld [vmem:[%s3 + $0x30] sm:$0xff]
    %v78 = vld [vmem:[%s3 + $0x38] sm:$0xff]
    %v79 = vld [vmem:[%s3 + $0x40] sm:$0xff]
    %v80 = vld [vmem:[%s3 + $0x48] sm:$0xff]
    %v81 = vld [vmem:[%s3 + $0x50] sm:$0xff]
    %v82 = vld [vmem:[%s3 + $0x58] sm:$0xff]
    %v83 = vld [vmem:[%s3 + $0x60] sm:$0xff]
    %v84 = vld [vmem:[%s3 + $0x68] sm:$0xff]
    %v85 = vld [vmem:[%s3 + $0x70] sm:$0xff]
    %v86 = vld [vmem:[%s3 + $0x78] sm:$0xff]
    %v87 = vpack.c.bf16 %v72, %v71
    %v88 = vpack.c.bf16 %v74, %v73
    %v89 = vpack.c.bf16 %v76, %v75
    %v90 = vpack.c.bf16 %v78, %v77
    %v91 = vpack.c.bf16 %v80, %v79
    %v92 = vpack.c.bf16 %v82, %v81
    %v93 = vpack.c.bf16 %v84, %v83
    %v94 = vpack.c.bf16 %v86, %v85
    %95 = vmatpush.bf16.msra.mxu0 %v94
    %96 = vmatpush.bf16.msra.mxu0 %v93
    %97 = vmatpush.bf16.msra.mxu0 %v92
    %98 = vmatpush.bf16.msra.mxu0 %v91
    %99 = vmatpush.bf16.msra.mxu0 %v90
    %100 = vmatpush.bf16.msra.mxu0 %v89
    %101 = vmatpush.bf16.msra.mxu0 %v88
    %102 = vmatpush.bf16.msra.mxu0 %v87
    %103 = vmatmul.bf16.gmra.mxu0 %v70
    %v104 = vpop.f32.mrf.mxu0
    %v105 = vadd.f32 0.0, %v104
    %v106 = vpop.f32.mrf.mxu0
    %v107 = vadd.f32 0.0, %v106
    %108 = vdwg.mxu0
    %v109 = vadd.f32 %v68, %v105
    %v110 = vadd.f32 %v69, %v107
    %111 = vst.msk [vmem:[#allocation2] sm:$0xff] %vm48, %v109
    %112 = vst.msk [vmem:[#allocation2 + $0x8] sm:$0xff] %vm48, %v110
    // Predicated region
    $region26: #{tpu_custom_call.1} parent=1 // pred_check
      %p113 = pneg %p22
    $region27: #{tpu_custom_call.1} parent=1 // pred_check_branch
      %115 = sbr.rel (%p113) target = $region29
    $region28: #{tpu_custom_call.1} parent=1 // pred_region
      %v116 = vld [vmem:[#allocation2] sm:$0xff]
      %v117 = vld [vmem:[#allocation2 + $0x8] sm:$0xff]
      %v118 = vld [vmem:[%s4] sm:$0x1]
      %v120 = vperm.slane %v118, 0
      %v122 = vadd.f32 %v116, %v120
      %v123 = vadd.f32 %v117, %v120
      %124 = vst.msk [vmem:[#allocation3] sm:$0xff] %vm48, %v122
      %125 = vst.msk [vmem:[#allocation3 + $0x8] sm:$0xff] %vm48, %v123
    $region29: #{tpu_custom_call.1} parent=1 // pred_fallthru
      _
    // Predicated region
    $region30: #{tpu_custom_call.1} parent=1 // pred_check
      _
    $region31: #{tpu_custom_call.1} parent=1 // pred_check_branch
      %127 = sbr.rel (0) target = $region33
    $region32: #{tpu_custom_call.1} parent=1 // pred_region
      %129 = vsyncadd [#allocation4], 0
      %s130 = sshll.u32 [#allocation3], 4
      %s131 = int_to_ptr.vmem [resolvable:$true] %s130
      %s132 = sshll.u32 %s5, 4
      %s133 = int_to_ptr.hbm [resolvable:$true] %s132
      %138 = dma.vmem_to_hbm [thread:$0]  %s131, 256, %s133, [#allocation4], 128, 128, 8
    $region33: #{tpu_custom_call.1} parent=1 // pred_fallthru
      _
    // Predicated region
    $region34: #{tpu_custom_call.1} parent=1 // pred_check
      _
    $region35: #{tpu_custom_call.1} parent=1 // pred_check_branch
      %140 = sbr.rel (0) target = $region37
    $region36: #{tpu_custom_call.1} parent=1 // pred_region
      %142 = dma.done [#allocation4], 256
    $region37: #{tpu_custom_call.1} parent=1 // pred_fallthru
      _
    %143 = vsyncpa [#allocation4], 1

// kernel: tpu_custom_call.1
$region0: #{tpu_custom_call.1}
  #allocation0 [shape = 'u32[]', space=smem, size = 0x4, offset = 0x4, fixed_abs, tag = 'smem constant byte address 0x4 - core index']
  #allocation1 [shape = 'u32[72,128]{1,0:T(1,128)}', space=vmem, size = 0x9000, scoped, tag = 'internal scratch']
  #allocation2 [shape = 'f32[16,64]{1,0:T(8,128)}', space=vmem, size = 0x2000, scoped, tag = 'scratch operand']
  %s0 = inlined_call_operand.vmem [shape: f32[16,64], index: 0, kind: input, shape index: {}]
  %s1 = inlined_call_operand.vmem [shape: f32[64,128], index: 1, kind: input, shape index: {}]
  %s2 = inlined_call_operand.vmem [shape: f32[1,128], index: 2, kind: input, shape index: {}]
  %s3 = inlined_call_operand.vmem [shape: f32[128,64], index: 3, kind: input, shape index: {}]
  %s4 = inlined_call_operand.vmem [shape: f32[1,64], index: 4, kind: input, shape index: {}]
  %s5 = inlined_call_operand.hbm [shape: f32[16,64], index: 5, kind: output, shape index: {}]
  %s6 = sld [smem:[#allocation0]]
  $region38: #{tpu_custom_call.1} parent=0
    _
  %s8 = ssub.s32 1, %s6
  %s9 = scalar_select 0, %s8, %s6
  $region1: #{tpu_custom_call.1} parent=0
    #allocation3 [shape = 'u8[8192]{0}', space=vmem, size = 0x2000, scoped, tag = 'output window, operand 0, single buffered']
    #allocation4 [shape = 's32[1]{0}', space=sflag, size = 0x4, scoped, tag = 'scoped memory for tpu_custom_call.1']
    %10 = vsyncpa [#allocation4], 0
    // Predicated region
    $region2: #{tpu_custom_call.1} parent=1 // pred_check
      _
    $region3: #{tpu_custom_call.1} parent=1 // pred_check_branch
      %12 = sbr.rel (0) target = $region5
    $region4: #{tpu_custom_call.1} parent=1 // pred_region
      _
    $region5: #{tpu_custom_call.1} parent=1 // pred_fallthru
      _
    // Predicated region
    $region6: #{tpu_custom_call.1} parent=1 // pred_check
      _
    $region7: #{tpu_custom_call.1} parent=1 // pred_check_branch
      %14 = sbr.rel (0) target = $region9
    $region8: #{tpu_custom_call.1} parent=1 // pred_region
      _
    $region9: #{tpu_custom_call.1} parent=1 // pred_fallthru
      _
    // Predicated region
    $region10: #{tpu_custom_call.1} parent=1 // pred_check
      _
    $region11: #{tpu_custom_call.1} parent=1 // pred_check_branch
      %16 = sbr.rel (0) target = $region13
    $region12: #{tpu_custom_call.1} parent=1 // pred_region
      _
    $region13: #{tpu_custom_call.1} parent=1 // pred_fallthru
      _
    // Predicated region
    $region14: #{tpu_custom_call.1} parent=1 // pred_check
      _
    $region15: #{tpu_custom_call.1} parent=1 // pred_check_branch
      %18 = sbr.rel (0) target = $region17
    $region16: #{tpu_custom_call.1} parent=1 // pred_region
      _
    $region17: #{tpu_custom_call.1} parent=1 // pred_fallthru
      _
    // Predicated region
    $region18: #{tpu_custom_call.1} parent=1 // pred_check
      _
    $region19: #{tpu_custom_call.1} parent=1 // pred_check_branch
      %20 = sbr.rel (0) target = $region21
    $region20: #{tpu_custom_call.1} parent=1 // pred_region
      _
    $region21: #{tpu_custom_call.1} parent=1 // pred_fallthru
      _
    %p22 = scmp.eq.s32.totalorder 0, 0
    // Predicated region
    $region22: #{tpu_custom_call.1} parent=1 // pred_check
      %p23 = pneg %p22
    $region23: #{tpu_custom_call.1} parent=1 // pred_check_branch
      %25 = sbr.rel (%p23) target = $region25
    $region24: #{tpu_custom_call.1} parent=1 // pred_region
      %vm26 = vcmask 523264
      %27 = vst.msk [vmem:[#allocation2] sm:$0xff] %vm26, 0.0
      %28 = vst.msk [vmem:[#allocation2 + $0x8] sm:$0xff] %vm26, 0.0
    $region25: #{tpu_custom_call.1} parent=1 // pred_fallthru
      _
    %v29 = vld [vmem:[%s0] sm:$0xff]
    %v30 = vld [vmem:[%s0 + $0x8] sm:$0xff]
    %v31 = vpack.c.bf16 %v30, %v29
    %v32 = vld [vmem:[%s1] sm:$0xff]
    %v33 = vld [vmem:[%s1 + $0x8] sm:$0xff]
    %v34 = vld [vmem:[%s1 + $0x10] sm:$0xff]
    %v35 = vld [vmem:[%s1 + $0x18] sm:$0xff]
    %v36 = vld [vmem:[%s1 + $0x20] sm:$0xff]
    %v37 = vld [vmem:[%s1 + $0x28] sm:$0xff]
    %v38 = vld [vmem:[%s1 + $0x30] sm:$0xff]
    %v39 = vld [vmem:[%s1 + $0x38] sm:$0xff]
    %v40 = vpack.c.bf16 %v33, %v32
    %v41 = vpack.c.bf16 %v35, %v34
    %v42 = vpack.c.bf16 %v37, %v36
    %v43 = vpack.c.bf16 %v39, %v38
    %v44 = vld [vmem:[%s2] sm:$0x1]
    %v46 = vperm.slane %v44, 0
    %vm48 = vcmask 523264
    %v50 = vsel %vm48, %v31, 0
    %52 = vmatpush.bf16.msra.mxu0 0
    %53 = vmatpush.bf16.msra.mxu0 0
    %54 = vmatpush.bf16.msra.mxu0 0
    %55 = vmatpush.bf16.msra.mxu0 0
    %56 = vmatpush.bf16.msra.mxu0 %v43
    %57 = vmatpush.bf16.msra.mxu0 %v42
    %58 = vmatpush.bf16.msra.mxu0 %v41
    %59 = vmatpush.bf16.msra.mxu0 %v40
    %60 = vmatmul.bf16.gmra.mxu0 %v50
    %v61 = vpop.f32.mrf.mxu0
    %v62 = vadd.f32 %v46, %v61
    %v63 = vpop.f32.mrf.mxu0
    %v64 = vadd.f32 %v46, %v63
    %65 = vdwg.mxu0
    %v66 = vmax.f32 %v62, 0.0
    %v67 = vmax.f32 %v64, 0.0
    %v68 = vld [vmem:[#allocation2] sm:$0xff]
    %v69 = vld [vmem:[#allocation2 + $0x8] sm:$0xff]
    %v70 = vpack.c.bf16 %v67, %v66
    %v71 = vld [vmem:[%s3] sm:$0xff]
    %v72 = vld [vmem:[%s3 + $0x8] sm:$0xff]
    %v73 = vld [vmem:[%s3 + $0x10] sm:$0xff]
    %v74 = vld [vmem:[%s3 + $0x18] sm:$0xff]
    %v75 = vld [vmem:[%s3 + $0x20] sm:$0xff]
    %v76 = vld [vmem:[%s3 + $0x28] sm:$0xff]
    %v77 = vld [vmem:[%s3 + $0x30] sm:$0xff]
    %v78 = vld [vmem:[%s3 + $0x38] sm:$0xff]
    %v79 = vld [vmem:[%s3 + $0x40] sm:$0xff]
    %v80 = vld [vmem:[%s3 + $0x48] sm:$0xff]
    %v81 = vld [vmem:[%s3 + $0x50] sm:$0xff]
    %v82 = vld [vmem:[%s3 + $0x58] sm:$0xff]
    %v83 = vld [vmem:[%s3 + $0x60] sm:$0xff]
    %v84 = vld [vmem:[%s3 + $0x68] sm:$0xff]
    %v85 = vld [vmem:[%s3 + $0x70] sm:$0xff]
    %v86 = vld [vmem:[%s3 + $0x78] sm:$0xff]
    %v87 = vpack.c.bf16 %v72, %v71
    %v88 = vpack.c.bf16 %v74, %v73
    %v89 = vpack.c.bf16 %v76, %v75
    %v90 = vpack.c.bf16 %v78, %v77
    %v91 = vpack.c.bf16 %v80, %v79
    %v92 = vpack.c.bf16 %v82, %v81
    %v93 = vpack.c.bf16 %v84, %v83
    %v94 = vpack.c.bf16 %v86, %v85
    %95 = vmatpush.bf16.msra.mxu0 %v94
    %96 = vmatpush.bf16.msra.mxu0 %v93
    %97 = vmatpush.bf16.msra.mxu0 %v92
    %98 = vmatpush.bf16.msra.mxu0 %v91
    %99 = vmatpush.bf16.msra.mxu0 %v90
    %100 = vmatpush.bf16.msra.mxu0 %v89
    %101 = vmatpush.bf16.msra.mxu0 %v88
    %102 = vmatpush.bf16.msra.mxu0 %v87
    %103 = vmatmul.bf16.gmra.mxu0 %v70
    %v104 = vpop.f32.mrf.mxu0
    %v105 = vadd.f32 0.0, %v104
    %v106 = vpop.f32.mrf.mxu0
    %v107 = vadd.f32 0.0, %v106
    %108 = vdwg.mxu0
    %v109 = vadd.f32 %v68, %v105
    %v110 = vadd.f32 %v69, %v107
    %111 = vst.msk [vmem:[#allocation2] sm:$0xff] %vm48, %v109
    %112 = vst.msk [vmem:[#allocation2 + $0x8] sm:$0xff] %vm48, %v110
    // Predicated region
    $region26: #{tpu_custom_call.1} parent=1 // pred_check
      %p113 = pneg %p22
    $region27: #{tpu_custom_call.1} parent=1 // pred_check_branch
      %115 = sbr.rel (%p113) target = $region29
    $region28: #{tpu_custom_call.1} parent=1 // pred_region
      %v116 = vld [vmem:[#allocation2] sm:$0xff]
      %v117 = vld [vmem:[#allocation2 + $0x8] sm:$0xff]
      %v118 = vld [vmem:[%s4] sm:$0x1]
      %v120 = vperm.slane %v118, 0
      %v122 = vadd.f32 %v116, %v120
      %v123 = vadd.f32 %v117, %v120
      %124 = vst.msk [vmem:[#allocation3] sm:$0xff] %vm48, %v122
      %125 = vst.msk [vmem:[#allocation3 + $0x8] sm:$0xff] %vm48, %v123
    $region29: #{tpu_custom_call.1} parent=1 // pred_fallthru
      _
    // Predicated region
    $region30: #{tpu_custom_call.1} parent=1 // pred_check
      _
    $region31: #{tpu_custom_call.1} parent=1 // pred_check_branch
      %127 = sbr.rel (0) target = $region33
    $region32: #{tpu_custom_call.1} parent=1 // pred_region
      %129 = vsyncadd [#allocation4], 0
      %s130 = sshll.u32 [#allocation3], 4
      %s131 = int_to_ptr.vmem [resolvable:$true] %s130
      %s132 = sshll.u32 %s5, 4
      %s133 = int_to_ptr.hbm [resolvable:$true] %s132
      %138 = dma.vmem_to_hbm [thread:$0]  %s131, 256, %s133, [#allocation4], 128, 128, 8
    $region33: #{tpu_custom_call.1} parent=1 // pred_fallthru
      _
    // Predicated region
    $region34: #{tpu_custom_call.1} parent=1 // pred_check
      _
    $region35: #{tpu_custom_call.1} parent=1 // pred_check_branch
      %140 = sbr.rel (0) target = $region37
    $region36: #{tpu_custom_call.1} parent=1 // pred_region
      %142 = dma.done [#allocation4], 256
    $region37: #{tpu_custom_call.1} parent=1 // pred_fallthru
      _
    %143 = vsyncpa [#allocation4], 1

</llo_original>
